<compile_context>
chip_gen: v5e
topology: v5e:2x2
jax: 0.10.0
libtpu: 0.0.40
codegen_flags: <defaults>
</compile_context>

<pallas_src>
import jax
import jax.numpy as jnp
from jax.experimental import pallas as pl
from jax.experimental.pallas import tpu as pltpu

K = 2  # number of treatments (GANITE.k default)


def _round_up(n, m):
    return ((n + m - 1) // m) * m


def ganite_forward_kernel(x_ref, t_ref, w1_ref, b10_ref, b1d_ref,
                          w2_ref, b2_ref, w3_ref, b3_ref, out_ref):
    x = x_ref[...]                                 # (Bt, d_x)  weights dtype
    t = t_ref[...]                                 # (Bt, 1)    f32 in {0, 1}

    # Layer 1.  one_hot(t) @ W1t is folded into a per-treatment bias; with
    # K == 2 the select collapses to a single broadcast FMA on the VPU:
    #   bias1 = (b1 + W1t[0]) + t * (W1t[1] - W1t[0])
    bias1 = b10_ref[...] + t * b1d_ref[...]        # (Bt, H1) f32
    h1 = jnp.dot(x, w1_ref[...], preferred_element_type=jnp.float32)
    h1 = jnp.maximum(h1 + bias1, 0.0)              # ReLU, f32

    # Layer 2
    h2 = jnp.dot(h1.astype(w2_ref.dtype), w2_ref[...],
                 preferred_element_type=jnp.float32)
    h2 = jnp.maximum(h2 + b2_ref[...], 0.0)        # ReLU, f32

    # Output layer (no activation); output columns are lane-padded to 128.
    y = jnp.dot(h2.astype(w3_ref.dtype), w3_ref[...],
                preferred_element_type=jnp.float32) + b3_ref[...]
    out_ref[...] = y.astype(out_ref.dtype)


def ganite_forward(x, t, params, *, b_tile=1024, weights_dtype=jnp.bfloat16,
                   vmem_limit_bytes=None):
    """Pallas implementation of GANITE.forward (prediction under treatment t).

    b_tile: max rows per grid step (clamped to the batch for small B; split
            so the grid keeps >= 2 steps on large batches for megacore).
    weights_dtype: MXU operand dtype for x/W1x/W2/W3 (bf16 default on all
            generations); accumulation, biases and elementwise math stay f32.
            Note: x itself is also cast, i.e. this is a weights+activations
            low-precision scheme (tested tolerance 5e-2).
    """
    B, d_x = x.shape
    w1x, w1t, b1, w2, b2, w3, b3 = params
    assert w1t.shape[0] == 2, "kernel folds the one-hot bias assuming K == 2"
    # TODO(synk): generalize the folded layer-1 bias to K > 2 treatments.

    H1, H2, d_y = w1x.shape[1], w2.shape[1], w3.shape[1]
    H1p = _round_up(H1, 128)        # 200 -> 256: unmasked VPU lanes, MXU-tile K/N
    H2p = _round_up(H2, 128)
    d_yp = _round_up(d_y, 128)      # lane-dense output store (biggest store lever)

    compute_dtype = jnp.dtype(weights_dtype)
    out_dtype = x.dtype

    def pad2(a, rows, cols, dtype):
        a = a.astype(dtype)
        return jnp.pad(a, ((0, rows - a.shape[0]), (0, cols - a.shape[1])))

    # Fold the treatment embedding into layer-1 bias terms (f32).
    b1_eff0 = pad2(b1 + w1t[0:1], 1, H1p, jnp.float32)          # (1, H1p)
    b1_delta = pad2(w1t[1:2] - w1t[0:1], 1, H1p, jnp.float32)   # (1, H1p)
    w1x_p = pad2(w1x, d_x, H1p, compute_dtype)                  # (d_x, H1p)
    w2_p = pad2(w2, H1p, H2p, compute_dtype)                    # (H1p, H2p)
    b2_p = pad2(b2, 1, H2p, jnp.float32)                        # (1, H2p)
    w3_p = pad2(w3, H2p, d_yp, compute_dtype)                   # (H2p, d_yp)
    b3_p = pad2(b3, 1, d_yp, jnp.float32)                       # (1, d_yp)

    # ---- batch tiling -------------------------------------------------------
    b_tile_eff = max(8, min(int(b_tile), _round_up(B, 8)))
    b_tile_eff = _round_up(b_tile_eff, 8)
    # Keep at least 2 balanced grid steps on large batches so megacore (v7x,
    # dimension_semantics="parallel") has work for both TensorCores.
    if pl.cdiv(B, b_tile_eff) == 1 and B >= 512:
        b_tile_eff = _round_up(pl.cdiv(B, 2), 8)
    B_pad = pl.cdiv(B, b_tile_eff) * b_tile_eff
    n_steps = B_pad // b_tile_eff

    # Cast x in the wrapper (halves the per-tile DMA when bf16) and pad batch.
    x_c = x.astype(compute_dtype)
    t_f = t.astype(jnp.float32).reshape(B, 1)
    if B_pad != B:
        x_c = jnp.pad(x_c, ((0, B_pad - B), (0, 0)))
        t_f = jnp.pad(t_f, ((0, B_pad - B), (0, 0)))

    # v5e's scoped-VMEM default is 16 MiB; bump it for fat tiles (f32 h1/h2
    # intermediates + double-buffered tiles). 48 MiB stays under v7x's 64 MiB.
    if vmem_limit_bytes is None and b_tile_eff > 512:
        vmem_limit_bytes = 48 << 20

    flops = 2 * B_pad * (d_x * H1p + H1p * H2p + H2p * d_yp)
    bytes_accessed = (
        x_c.size * x_c.dtype.itemsize + t_f.size * 4
        + (w1x_p.size + w2_p.size + w3_p.size) * compute_dtype.itemsize
        + (b1_eff0.size + b1_delta.size + b2_p.size + b3_p.size) * 4
        + B_pad * d_yp * jnp.dtype(out_dtype).itemsize)
    cost = pl.CostEstimate(flops=flops, transcendentals=0,
                           bytes_accessed=bytes_accessed)

    def full_spec(a):
        # whole-array block, constant index -> resident across the grid
        return pl.BlockSpec(a.shape, lambda i: (0, 0))

    out = pl.pallas_call(
        ganite_forward_kernel,
        out_shape=jax.ShapeDtypeStruct((B_pad, d_yp), out_dtype),
        grid=(n_steps,),
        in_specs=[
            pl.BlockSpec((b_tile_eff, d_x), lambda i: (i, 0)),   # x tile
            pl.BlockSpec((b_tile_eff, 1), lambda i: (i, 0)),     # t tile
            full_spec(w1x_p), full_spec(b1_eff0), full_spec(b1_delta),
            full_spec(w2_p), full_spec(b2_p),
            full_spec(w3_p), full_spec(b3_p),
        ],
        out_specs=pl.BlockSpec((b_tile_eff, d_yp), lambda i: (i, 0)),
        compiler_params=pltpu.CompilerParams(
            dimension_semantics=("parallel",),
            vmem_limit_bytes=vmem_limit_bytes),
        cost_estimate=cost,
    )(x_c, t_f, w1x_p, b1_eff0, b1_delta, w2_p, b2_p, w3_p, b3_p)
    return out[:B, :d_y]


def init_ganite_ite_params(key, d_x, d_y=1, hidden_dims=(200, 200)):
    """Deterministic init of G_ite MLP params: dims [d_x + K, *hidden, d_y]."""
    dims = [d_x + K, *hidden_dims, d_y]
    keys = jax.random.split(key, len(dims) - 1)
    ws, bs = [], []
    for kk, din, dout in zip(keys, dims[:-1], dims[1:]):
        w = jax.random.normal(kk, (din, dout), jnp.float32) / jnp.sqrt(float(din))
        ws.append(w)
        bs.append(jnp.zeros((1, dout), jnp.float32))
    w1, w2, w3 = ws
    b1, b2, b3 = bs
    # split first-layer weight into x-part and one-hot(t)-part
    w1x, w1t = w1[:d_x], w1[d_x:]
    return (w1x, w1t, b1, w2, b2, w3, b3)


def ganite_forward_ref(x, t, params):
    """Pure-JAX reference of the PyTorch forward."""
    w1x, w1t, b1, w2, b2, w3, b3 = params
    t1h = jax.nn.one_hot(t.astype(jnp.int32), K, dtype=x.dtype)
    h1 = jax.nn.relu(x @ w1x + t1h @ w1t + b1)
    h2 = jax.nn.relu(h1 @ w2 + b2)
    return h2 @ w3 + b3


if __name__ == "__main__":
    key = jax.random.PRNGKey(0)
    k_x, k_t, k_p, k_x2, k_t2 = jax.random.split(key, 5)

    B, d_x, d_y = 8, 16, 1
    hidden_dims = (200, 200)  # module default

    x = jax.random.normal(k_x, (B, d_x), jnp.float32)
    t = jax.random.randint(k_t, (B,), 0, K, jnp.int32)
    params = init_ganite_ite_params(k_p, d_x, d_y, hidden_dims)
    ref = ganite_forward_ref(x, t, params)

    # exact f32 path (exercises small-batch clamping: tile = 8, no dead rows)
    out = jax.block_until_ready(
        ganite_forward(x, t, params, weights_dtype=jnp.float32))
    assert out.shape == (B, d_y)
    assert jnp.allclose(out, ref, atol=1e-5, rtol=1e-5), (out, ref)

    # default bf16 MXU-operand path (all generations), f32 accumulation
    out_bf16 = jax.block_until_ready(ganite_forward(x, t, params))
    assert out_bf16.shape == (B, d_y)
    assert jnp.allclose(out_bf16, ref, atol=5e-2, rtol=5e-2), (out_bf16, ref)

    # larger batch: exercises batch padding + the >=2-grid-step (megacore) path
    B2 = 600
    x2 = jax.random.normal(k_x2, (B2, d_x), jnp.float32)
    t2 = jax.random.randint(k_t2, (B2,), 0, K, jnp.int32)
    ref2 = ganite_forward_ref(x2, t2, params)
    out2 = jax.block_until_ready(
        ganite_forward(x2, t2, params, weights_dtype=jnp.float32))
    assert out2.shape == (B2, d_y)
    assert jnp.allclose(out2, ref2, atol=1e-5, rtol=1e-5)

    print("KERNEL_OK")
</pallas_src>

<mosaic_0001>
module attributes {stable_mosaic.version = 11 : i64} {
  func.func @ganite_forward_kernel(%arg0: i32, %arg1: memref<8x16xf32, #tpu.memory_space<vmem>>, %arg2: memref<8x1xf32, #tpu.memory_space<vmem>>, %arg3: memref<16x256xf32, #tpu.memory_space<vmem>>, %arg4: memref<1x256xf32, #tpu.memory_space<vmem>>, %arg5: memref<1x256xf32, #tpu.memory_space<vmem>>, %arg6: memref<256x256xf32, #tpu.memory_space<vmem>>, %arg7: memref<1x256xf32, #tpu.memory_space<vmem>>, %arg8: memref<256x128xf32, #tpu.memory_space<vmem>>, %arg9: memref<1x128xf32, #tpu.memory_space<vmem>>, %arg10: memref<8x128xf32, #tpu.memory_space<vmem>>) attributes {dimension_semantics = [#tpu.dimension_semantics<parallel>], iteration_bounds = array<i64: 1>, scalar_prefetch = 0 : i64, scratch_operands = 0 : i64, tpu.core_type = #tpu.core_type<tc>, window_params = [{transform_indices = @transform_0, window_bounds = array<i64: 8, 16>}, {transform_indices = @transform_1, window_bounds = array<i64: 8, 1>}, {pipeline_mode = #tpu.pipeline_mode<synchronous>, transform_indices = @transform_2, window_bounds = array<i64: 16, 256>}, {pipeline_mode = #tpu.pipeline_mode<synchronous>, transform_indices = @transform_3, window_bounds = array<i64: 1, 256>}, {pipeline_mode = #tpu.pipeline_mode<synchronous>, transform_indices = @transform_4, window_bounds = array<i64: 1, 256>}, {pipeline_mode = #tpu.pipeline_mode<synchronous>, transform_indices = @transform_5, window_bounds = array<i64: 256, 256>}, {pipeline_mode = #tpu.pipeline_mode<synchronous>, transform_indices = @transform_6, window_bounds = array<i64: 1, 256>}, {pipeline_mode = #tpu.pipeline_mode<synchronous>, transform_indices = @transform_7, window_bounds = array<i64: 256, 128>}, {pipeline_mode = #tpu.pipeline_mode<synchronous>, transform_indices = @transform_8, window_bounds = array<i64: 1, 128>}, {transform_indices = @transform_9, window_bounds = array<i64: 8, 128>}]} {
    %c0 = arith.constant 0 : index
    %c0_0 = arith.constant 0 : index
    %0 = vector.load %arg1[%c0, %c0_0] : memref<8x16xf32, #tpu.memory_space<vmem>>, vector<8x16xf32>
    %c0_1 = arith.constant 0 : index
    %c0_2 = arith.constant 0 : index
    %1 = vector.load %arg2[%c0_1, %c0_2] : memref<8x1xf32, #tpu.memory_space<vmem>>, vector<8x1xf32>
    %c0_3 = arith.constant 0 : index
    %c0_4 = arith.constant 0 : index
    %2 = vector.load %arg4[%c0_3, %c0_4] : memref<1x256xf32, #tpu.memory_space<vmem>>, vector<1x256xf32>
    %c0_5 = arith.constant 0 : index
    %c0_6 = arith.constant 0 : index
    %3 = vector.load %arg5[%c0_5, %c0_6] : memref<1x256xf32, #tpu.memory_space<vmem>>, vector<1x256xf32>
    %4 = vector.broadcast %1 : vector<8x1xf32> to vector<8x256xf32>
    %5 = vector.broadcast %3 : vector<1x256xf32> to vector<8x256xf32>
    %6 = arith.mulf %4, %5 : vector<8x256xf32>
    %7 = vector.broadcast %2 : vector<1x256xf32> to vector<8x256xf32>
    %8 = arith.addf %7, %6 : vector<8x256xf32>
    %c0_7 = arith.constant 0 : index
    %c0_8 = arith.constant 0 : index
    %9 = vector.load %arg3[%c0_7, %c0_8] : memref<16x256xf32, #tpu.memory_space<vmem>>, vector<16x256xf32>
    %cst = arith.constant dense<0.000000e+00> : vector<8x256xf32>
    %10 = tpu.matmul %0, %9, %cst {dimension_numbers = #tpu.dot_dimension_numbers<[1], [0], [0], [1], [0, 0, 1, 1], [], []>} : vector<8x16xf32>, vector<16x256xf32>, vector<8x256xf32> -> vector<8x256xf32>
    %11 = arith.addf %10, %8 : vector<8x256xf32>
    %cst_9 = arith.constant 0.000000e+00 : f32
    %12 = vector.broadcast %cst_9 : f32 to vector<8x256xf32>
    %13 = arith.maximumf %11, %12 : vector<8x256xf32>
    %c0_10 = arith.constant 0 : index
    %c0_11 = arith.constant 0 : index
    %14 = vector.load %arg6[%c0_10, %c0_11] : memref<256x256xf32, #tpu.memory_space<vmem>>, vector<256x256xf32>
    %cst_12 = arith.constant dense<0.000000e+00> : vector<8x256xf32>
    %15 = tpu.matmul %13, %14, %cst_12 {dimension_numbers = #tpu.dot_dimension_numbers<[1], [0], [0], [1], [0, 0, 1, 1], [], []>} : vector<8x256xf32>, vector<256x256xf32>, vector<8x256xf32> -> vector<8x256xf32>
    %c0_13 = arith.constant 0 : index
    %c0_14 = arith.constant 0 : index
    %16 = vector.load %arg7[%c0_13, %c0_14] : memref<1x256xf32, #tpu.memory_space<vmem>>, vector<1x256xf32>
    %17 = vector.broadcast %16 : vector<1x256xf32> to vector<8x256xf32>
    %18 = arith.addf %15, %17 : vector<8x256xf32>
    %cst_15 = arith.constant 0.000000e+00 : f32
    %19 = vector.broadcast %cst_15 : f32 to vector<8x256xf32>
    %20 = arith.maximumf %18, %19 : vector<8x256xf32>
    %c0_16 = arith.constant 0 : index
    %c0_17 = arith.constant 0 : index
    %21 = vector.load %arg8[%c0_16, %c0_17] : memref<256x128xf32, #tpu.memory_space<vmem>>, vector<256x128xf32>
    %cst_18 = arith.constant dense<0.000000e+00> : vector<8x128xf32>
    %22 = tpu.matmul %20, %21, %cst_18 {dimension_numbers = #tpu.dot_dimension_numbers<[1], [0], [0], [1], [0, 0, 1, 1], [], []>} : vector<8x256xf32>, vector<256x128xf32>, vector<8x128xf32> -> vector<8x128xf32>
    %c0_19 = arith.constant 0 : index
    %c0_20 = arith.constant 0 : index
    %23 = vector.load %arg9[%c0_19, %c0_20] : memref<1x128xf32, #tpu.memory_space<vmem>>, vector<1x128xf32>
    %24 = vector.broadcast %23 : vector<1x128xf32> to vector<8x128xf32>
    %25 = arith.addf %22, %24 : vector<8x128xf32>
    %c0_21 = arith.constant 0 : index
    %c0_22 = arith.constant 0 : index
    %26 = vector.load %arg10[%c0_21, %c0_22] : memref<8x128xf32, #tpu.memory_space<vmem>>, vector<8x128xf32>
    tpu.vector_store %arg10[%c0_21, %c0_22], %25 {strides = array<i32>} : memref<8x128xf32, #tpu.memory_space<vmem>>, vector<8x128xf32>,
    return
  }
  func.func @transform_0(%arg0: i32) -> (i32, i32) {
    %c0_i32 = arith.constant 0 : i32
    %c0_i32_0 = arith.constant 0 : i32
    return %arg0, %c0_i32 : i32, i32
  }
  func.func @transform_1(%arg0: i32) -> (i32, i32) {
    %c0_i32 = arith.constant 0 : i32
    %c0_i32_0 = arith.constant 0 : i32
    return %arg0, %c0_i32 : i32, i32
  }
  func.func @transform_2(%arg0: i32) -> (i32, i32) {
    %c0_i32 = arith.constant 0 : i32
    %c0_i32_0 = arith.constant 0 : i32
    %c0_i32_1 = arith.constant 0 : i32
    return %c0_i32, %c0_i32_0 : i32, i32
  }
  func.func @transform_3(%arg0: i32) -> (i32, i32) {
    %c0_i32 = arith.constant 0 : i32
    %c0_i32_0 = arith.constant 0 : i32
    %c0_i32_1 = arith.constant 0 : i32
    return %c0_i32, %c0_i32_0 : i32, i32
  }
  func.func @transform_4(%arg0: i32) -> (i32, i32) {
    %c0_i32 = arith.constant 0 : i32
    %c0_i32_0 = arith.constant 0 : i32
    %c0_i32_1 = arith.constant 0 : i32
    return %c0_i32, %c0_i32_0 : i32, i32
  }
  func.func @transform_5(%arg0: i32) -> (i32, i32) {
    %c0_i32 = arith.constant 0 : i32
    %c0_i32_0 = arith.constant 0 : i32
    %c0_i32_1 = arith.constant 0 : i32
    return %c0_i32, %c0_i32_0 : i32, i32
  }
  func.func @transform_6(%arg0: i32) -> (i32, i32) {
    %c0_i32 = arith.constant 0 : i32
    %c0_i32_0 = arith.constant 0 : i32
    %c0_i32_1 = arith.constant 0 : i32
    return %c0_i32, %c0_i32_0 : i32, i32
  }
  func.func @transform_7(%arg0: i32) -> (i32, i32) {
    %c0_i32 = arith.constant 0 : i32
    %c0_i32_0 = arith.constant 0 : i32
    %c0_i32_1 = arith.constant 0 : i32
    return %c0_i32, %c0_i32_0 : i32, i32
  }
  func.func @transform_8(%arg0: i32) -> (i32, i32) {
    %c0_i32 = arith.constant 0 : i32
    %c0_i32_0 = arith.constant 0 : i32
    %c0_i32_1 = arith.constant 0 : i32
    return %c0_i32, %c0_i32_0 : i32, i32
  }
  func.func @transform_9(%arg0: i32) -> (i32, i32) {
    %c0_i32 = arith.constant 0 : i32
    %c0_i32_0 = arith.constant 0 : i32
    return %arg0, %c0_i32 : i32, i32
  }
}

</mosaic_0001>

<llo_original>
// kernel: tpu_custom_call.1
$region0: #{tpu_custom_call.1}
  #allocation0 [shape = 'u32[]', space=smem, size = 0x4, offset = 0x4, fixed_abs, tag = 'smem constant byte address 0x4 - core index']
  #allocation1 [shape = 'u32[72,128]{1,0:T(1,128)}', space=vmem, size = 0x9000, scoped, tag = 'internal scratch']
  %s0 = inlined_call_operand.vmem [shape: f32[8,16], index: 0, kind: input, shape index: {}]
  %s1 = inlined_call_operand.vmem [shape: f32[8,1], index: 1, kind: input, shape index: {}]
  %s2 = inlined_call_operand.hbm [shape: f32[16,256], index: 2, kind: input, shape index: {}]
  %s3 = inlined_call_operand.vmem [shape: f32[1,256], index: 3, kind: input, shape index: {}]
  %s4 = inlined_call_operand.vmem [shape: f32[1,256], index: 4, kind: input, shape index: {}]
  %s5 = inlined_call_operand.hbm [shape: f32[256,256], index: 5, kind: input, shape index: {}]
  %s6 = inlined_call_operand.vmem [shape: f32[1,256], index: 6, kind: input, shape index: {}]
  %s7 = inlined_call_operand.hbm [shape: f32[256,128], index: 7, kind: input, shape index: {}]
  %s8 = inlined_call_operand.vmem [shape: f32[1,128], index: 8, kind: input, shape index: {}]
  %s9 = inlined_call_operand.hbm [shape: f32[8,128], index: 9, kind: output, shape index: {}]
  %s10 = sld [smem:[#allocation0]]
  $region58: #{tpu_custom_call.1} parent=0
    _
  %s12 = ssub.s32 1, %s10
  %s13 = scalar_select 0, %s12, %s10
  $region1: #{tpu_custom_call.1} parent=0
    #allocation2 [shape = 'u8[16384]{0}', space=vmem, size = 0x4000, scoped, tag = 'input window, operand 2, single buffered']
    #allocation3 [shape = 's32[1]{0}', space=sflag, size = 0x4, scoped, tag = 'scoped memory for tpu_custom_call.1']
    #allocation4 [shape = 's32[1]{0}', space=sflag, size = 0x4, scoped, tag = 'scoped memory for tpu_custom_call.1']
    #allocation5 [shape = 'u8[262144]{0}', space=vmem, size = 0x40000, scoped, tag = 'input window, operand 5, single buffered']
    #allocation6 [shape = 's32[1]{0}', space=sflag, size = 0x4, scoped, tag = 'scoped memory for tpu_custom_call.1']
    #allocation7 [shape = 'u8[131072]{0}', space=vmem, size = 0x20000, scoped, tag = 'input window, operand 7, single buffered']
    #allocation8 [shape = 'u8[4096]{0}', space=vmem, size = 0x1000, scoped, tag = 'output window, operand 0, single buffered']
    %14 = vsyncpa [#allocation3], 0
    %15 = vsyncpa [#allocation6], 0
    %16 = vsyncpa [#allocation4], 0
    // Predicated region
    $region2: #{tpu_custom_call.1} parent=1 // pred_check
      _
    $region3: #{tpu_custom_call.1} parent=1 // pred_check_branch
      %18 = sbr.rel (0) target = $region5
    $region4: #{tpu_custom_call.1} parent=1 // pred_region
      _
    $region5: #{tpu_custom_call.1} parent=1 // pred_fallthru
      _
    // Predicated region
    $region6: #{tpu_custom_call.1} parent=1 // pred_check
      _
    $region7: #{tpu_custom_call.1} parent=1 // pred_check_branch
      %20 = sbr.rel (0) target = $region9
    $region8: #{tpu_custom_call.1} parent=1 // pred_region
      _
    $region9: #{tpu_custom_call.1} parent=1 // pred_fallthru
      _
    // Predicated region
    $region10: #{tpu_custom_call.1} parent=1 // pred_check
      _
    $region11: #{tpu_custom_call.1} parent=1 // pred_check_branch
      %22 = sbr.rel (0) target = $region13
    $region12: #{tpu_custom_call.1} parent=1 // pred_region
      %24 = vsyncadd [#allocation3], 0
      %s25 = sshll.u32 %s2, 4
      %s26 = int_to_ptr.hbm [resolvable:$true] %s25
      %s27 = sshll.u32 [#allocation2], 4
      %s28 = int_to_ptr.vmem [resolvable:$true] %s27
      %33 = dma.hbm_to_vmem [thread:$0]  %s26, 512, %s28, [#allocation3], 256, 256, 16
    $region13: #{tpu_custom_call.1} parent=1 // pred_fallthru
      _
    // Predicated region
    $region14: #{tpu_custom_call.1} parent=1 // pred_check
      _
    $region15: #{tpu_custom_call.1} parent=1 // pred_check_branch
      %35 = sbr.rel (0) target = $region17
    $region16: #{tpu_custom_call.1} parent=1 // pred_region
      _
    $region17: #{tpu_custom_call.1} parent=1 // pred_fallthru
      _
    // Predicated region
    $region18: #{tpu_custom_call.1} parent=1 // pred_check
      _
    $region19: #{tpu_custom_call.1} parent=1 // pred_check_branch
      %37 = sbr.rel (0) target = $region21
    $region20: #{tpu_custom_call.1} parent=1 // pred_region
      _
    $region21: #{tpu_custom_call.1} parent=1 // pred_fallthru
      _
    // Predicated region
    $region22: #{tpu_custom_call.1} parent=1 // pred_check
      _
    $region23: #{tpu_custom_call.1} parent=1 // pred_check_branch
      %39 = sbr.rel (0) target = $region25
    $region24: #{tpu_custom_call.1} parent=1 // pred_region
      %41 = vsyncadd [#allocation6], 0
      %s42 = sshll.u32 %s5, 4
      %s43 = int_to_ptr.hbm [resolvable:$true] %s42
      %s44 = sshll.u32 [#allocation5], 4
      %s45 = int_to_ptr.vmem [resolvable:$true] %s44
      %50 = dma.hbm_to_vmem [thread:$0]  %s43, 8192, %s45, [#allocation6], 256, 256, 16
    $region25: #{tpu_custom_call.1} parent=1 // pred_fallthru
      _
    // Predicated region
    $region26: #{tpu_custom_call.1} parent=1 // pred_check
      _
    $region27: #{tpu_custom_call.1} parent=1 // pred_check_branch
      %52 = sbr.rel (0) target = $region29
    $region28: #{tpu_custom_call.1} parent=1 // pred_region
      _
    $region29: #{tpu_custom_call.1} parent=1 // pred_fallthru
      _
    // Predicated region
    $region30: #{tpu_custom_call.1} parent=1 // pred_check
      _
    $region31: #{tpu_custom_call.1} parent=1 // pred_check_branch
      %54 = sbr.rel (0) target = $region33
    $region32: #{tpu_custom_call.1} parent=1 // pred_region
      %56 = vsyncadd [#allocation6], 0
      %s57 = sshll.u32 %s7, 4
      %s58 = int_to_ptr.hbm [resolvable:$true] %s57
      %s59 = sshll.u32 [#allocation7], 4
      %s60 = int_to_ptr.vmem [resolvable:$true] %s59
      %65 = dma.hbm_to_vmem [thread:$0]  %s58, 4096, %s60, [#allocation6], 128, 128, 8
    $region33: #{tpu_custom_call.1} parent=1 // pred_fallthru
      _
    // Predicated region
    $region34: #{tpu_custom_call.1} parent=1 // pred_check
      _
    $region35: #{tpu_custom_call.1} parent=1 // pred_check_branch
      %67 = sbr.rel (0) target = $region37
    $region36: #{tpu_custom_call.1} parent=1 // pred_region
      _
    $region37: #{tpu_custom_call.1} parent=1 // pred_fallthru
      _
    // Predicated region
    $region38: #{tpu_custom_call.1} parent=1 // pred_check
      _
    $region39: #{tpu_custom_call.1} parent=1 // pred_check_branch
      %69 = sbr.rel (0) target = $region41
    $region40: #{tpu_custom_call.1} parent=1 // pred_region
      %71 = dma.done [#allocation3], 512
    $region41: #{tpu_custom_call.1} parent=1 // pred_fallthru
      _
    // Predicated region
    $region42: #{tpu_custom_call.1} parent=1 // pred_check
      _
    $region43: #{tpu_custom_call.1} parent=1 // pred_check_branch
      %73 = sbr.rel (0) target = $region45
    $region44: #{tpu_custom_call.1} parent=1 // pred_region
      %75 = dma.done [#allocation6], 8192
    $region45: #{tpu_custom_call.1} parent=1 // pred_fallthru
      _
    // Predicated region
    $region46: #{tpu_custom_call.1} parent=1 // pred_check
      _
    $region47: #{tpu_custom_call.1} parent=1 // pred_check_branch
      %77 = sbr.rel (0) target = $region49
    $region48: #{tpu_custom_call.1} parent=1 // pred_region
      %79 = dma.done [#allocation6], 4096
    $region49: #{tpu_custom_call.1} parent=1 // pred_fallthru
      _
    %v80 = vld [vmem:[%s0] sm:$0xff]
    %v81 = vld [vmem:[%s1] sm:$0xff]
    %v82 = vld [vmem:[%s3] sm:$0x3]
    %v83 = vld [vmem:[%s4] sm:$0x3]
    %85 = vset.pattern.permute.xlu0 0
    %86 = vperm.xlu0 %85, %v81
    %v87 = vpop.permute.xlu0 %86
    %v90 = vperm.slane %v83, 0
    %v91 = vperm.slane %v83, 1
    %v94 = vmul.f32 %v87, %v90
    %v95 = vmul.f32 %v87, %v91
    %v97 = vperm.slane %v82, 0
    %v98 = vperm.slane %v82, 1
    %v101 = vadd.f32 %v97, %v94
    %v102 = vadd.f32 %v98, %v95
    %v103 = vld [vmem:[#allocation2] sm:$0xff]
    %v104 = vld [vmem:[#allocation2 + $0x8] sm:$0xff]
    %v105 = vld [vmem:[#allocation2 + $0x10] sm:$0xff]
    %v106 = vld [vmem:[#allocation2 + $0x18] sm:$0xff]
    %vm107 = vcmask 130048
    %v109 = vsel %vm107, %v80, 0
    %111 = vmatpush.msra.mxu0 0.0
    %112 = vmatpush.msra.mxu0 0.0
    %113 = vmatpush.msra.mxu0 0.0
    %114 = vmatpush.msra.mxu0 0.0
    %115 = vmatpush.msra.mxu0 0.0
    %116 = vmatpush.msra.mxu0 0.0
    %117 = vmatpush.msra.mxu0 0.0
    %118 = vmatpush.msra.mxu0 0.0
    %119 = vmatpush.msra.mxu0 0.0
    %120 = vmatpush.msra.mxu0 0.0
    %121 = vmatpush.msra.mxu0 0.0
    %122 = vmatpush.msra.mxu0 0.0
    %123 = vmatpush.msra.mxu0 0.0
    %124 = vmatpush.msra.mxu0 0.0
    %125 = vmatpush.msra.mxu0 %v105
    %126 = vmatpush.msra.mxu0 %v103
    %127 = vmatmul.f32.gmra.mxu0 %v109
    %v128 = vpop.f32.mrf.mxu0
    %v129 = vadd.f32 %v101, %v128
    %130 = vdwg.mxu0
    %131 = vmatpush.msra.mxu0 0.0
    %132 = vmatpush.msra.mxu0 0.0
    %133 = vmatpush.msra.mxu0 0.0
    %134 = vmatpush.msra.mxu0 0.0
    %135 = vmatpush.msra.mxu0 0.0
    %136 = vmatpush.msra.mxu0 0.0
    %137 = vmatpush.msra.mxu0 0.0
    %138 = vmatpush.msra.mxu0 0.0
    %139 = vmatpush.msra.mxu0 0.0
    %140 = vmatpush.msra.mxu0 0.0
    %141 = vmatpush.msra.mxu0 0.0
    %142 = vmatpush.msra.mxu0 0.0
    %143 = vmatpush.msra.mxu0 0.0
    %144 = vmatpush.msra.mxu0 0.0
    %145 = vmatpush.msra.mxu0 %v106
    %146 = vmatpush.msra.mxu0 %v104
    %147 = vmatmul.f32.gmra.mxu0 %v109
    %v148 = vpop.f32.mrf.mxu0
    %v149 = vadd.f32 %v102, %v148
    %150 = vdwg.mxu0
    %v151 = vmax.f32 %v129, 0.0
    %v152 = vmax.f32 %v149, 0.0
    %v153 = vld [vmem:[#allocation5] sm:$0xff]
    %v154 = vld [vmem:[#allocation5 + $0x8] sm:$0xff]
    %v155 = vld [vmem:[#allocation5 + $0x10] sm:$0xff]
    %v156 = vld [vmem:[#allocation5 + $0x18] sm:$0xff]
    %v157 = vld [vmem:[#allocation5 + $0x20] sm:$0xff]
    %v158 = vld [vmem:[#allocation5 + $0x28] sm:$0xff]
    %v159 = vld [vmem:[#allocation5 + $0x30] sm:$0xff]
    %v160 = vld [vmem:[#allocation5 + $0x38] sm:$0xff]
    %v161 = vld [vmem:[#allocation5 + $0x40] sm:$0xff]
    %v162 = vld [vmem:[#allocation5 + $0x48] sm:$0xff]
    %v163 = vld [vmem:[#allocation5 + $0x50] sm:$0xff]
    %v164 = vld [vmem:[#allocation5 + $0x58] sm:$0xff]
    %v165 = vld [vmem:[#allocation5 + $0x60] sm:$0xff]
    %v166 = vld [vmem:[#allocation5 + $0x68] sm:$0xff]
    %v167 = vld [vmem:[#allocation5 + $0x70] sm:$0xff]
    %v168 = vld [vmem:[#allocation5 + $0x78] sm:$0xff]
    %v169 = vld [vmem:[#allocation5 + $0x80] sm:$0xff]
    %v170 = vld [vmem:[#allocation5 + $0x88] sm:$0xff]
    %v171 = vld [vmem:[#allocation5 + $0x90] sm:$0xff]
    %v172 = vld [vmem:[#allocation5 + $0x98] sm:$0xff]
    %v173 = vld [vmem:[#allocation5 + $0xa0] sm:$0xff]
    %v174 = vld [vmem:[#allocation5 + $0xa8] sm:$0xff]
    %v175 = vld [vmem:[#allocation5 + $0xb0] sm:$0xff]
    %v176 = vld [vmem:[#allocation5 + $0xb8] sm:$0xff]
    %v177 = vld [vmem:[#allocation5 + $0xc0] sm:$0xff]
    %v178 = vld [vmem:[#allocation5 + $0xc8] sm:$0xff]
    %v179 = vld [vmem:[#allocation5 + $0xd0] sm:$0xff]
    %v180 = vld [vmem:[#allocation5 + $0xd8] sm:$0xff]
    %v181 = vld [vmem:[#allocation5 + $0xe0] sm:$0xff]
    %v182 = vld [vmem:[#allocation5 + $0xe8] sm:$0xff]
    %v183 = vld [vmem:[#allocation5 + $0xf0] sm:$0xff]
    %v184 = vld [vmem:[#allocation5 + $0xf8] sm:$0xff]
    %v185 = vld [vmem:[#allocation5 + $0x100] sm:$0xff]
    %v186 = vld [vmem:[#allocation5 + $0x108] sm:$0xff]
    %v187 = vld [vmem:[#allocation5 + $0x110] sm:$0xff]
    %v188 = vld [vmem:[#allocation5 + $0x118] sm:$0xff]
    %v189 = vld [vmem:[#allocation5 + $0x120] sm:$0xff]
    %v190 = vld [vmem:[#allocation5 + $0x128] sm:$0xff]
    %v191 = vld [vmem:[#allocation5 + $0x130] sm:$0xff]
    %v192 = vld [vmem:[#allocation5 + $0x138] sm:$0xff]
    %v193 = vld [vmem:[#allocation5 + $0x140] sm:$0xff]
    %v194 = vld [vmem:[#allocation5 + $0x148] sm:$0xff]
    %v195 = vld [vmem:[#allocation5 + $0x150] sm:$0xff]
    %v196 = vld [vmem:[#allocation5 + $0x158] sm:$0xff]
    %v197 = vld [vmem:[#allocation5 + $0x160] sm:$0xff]
    %v198 = vld [vmem:[#allocation5 + $0x168] sm:$0xff]
    %v199 = vld [vmem:[#allocation5 + $0x170] sm:$0xff]
    %v200 = vld [vmem:[#allocation5 + $0x178] sm:$0xff]
    %v201 = vld [vmem:[#allocation5 + $0x180] sm:$0xff]
    %v202 = vld [vmem:[#allocation5 + $0x188] sm:$0xff]
    %v203 = vld [vmem:[#allocation5 + $0x190] sm:$0xff]
    %v204 = vld [vmem:[#allocation5 + $0x198] sm:$0xff]
    %v205 = vld [vmem:[#allocation5 + $0x1a0] sm:$0xff]
    %v206 = vld [vmem:[#allocation5 + $0x1a8] sm:$0xff]
    %v207 = vld [vmem:[#allocation5 + $0x1b0] sm:$0xff]
    %v208 = vld [vmem:[#allocation5 + $0x1b8] sm:$0xff]
    %v209 = vld [vmem:[#allocation5 + $0x1c0] sm:$0xff]
    %v210 = vld [vmem:[#allocation5 + $0x1c8] sm:$0xff]
    %v211 = vld [vmem:[#allocation5 + $0x1d0] sm:$0xff]
    %v212 = vld [vmem:[#allocation5 + $0x1d8] sm:$0xff]
    %v213 = vld [vmem:[#allocation5 + $0x1e0] sm:$0xff]
    %v214 = vld [vmem:[#allocation5 + $0x1e8] sm:$0xff]
    %v215 = vld [vmem:[#allocation5 + $0x1f0] sm:$0xff]
    %v216 = vld [vmem:[#allocation5 + $0x1f8] sm:$0xff]
    %v217 = vld [vmem:[%s6] sm:$0x3]
    %v219 = vperm.slane %v217, 0
    %v220 = vperm.slane %v217, 1
    %223 = vmatpush.msra.mxu0 %v183
    %224 = vmatpush.msra.mxu0 %v181
    %225 = vmatpush.msra.mxu0 %v179
    %226 = vmatpush.msra.mxu0 %v177
    %227 = vmatpush.msra.mxu0 %v175
    %228 = vmatpush.msra.mxu0 %v173
    %229 = vmatpush.msra.mxu0 %v171
    %230 = vmatpush.msra.mxu0 %v169
    %231 = vmatpush.msra.mxu0 %v167
    %232 = vmatpush.msra.mxu0 %v165
    %233 = vmatpush.msra.mxu0 %v163
    %234 = vmatpush.msra.mxu0 %v161
    %235 = vmatpush.msra.mxu0 %v159
    %236 = vmatpush.msra.mxu0 %v157
    %237 = vmatpush.msra.mxu0 %v155
    %238 = vmatpush.msra.mxu0 %v153
    %239 = vmatmul.f32.gmra.mxu0 %v151
    %v240 = vpop.f32.mrf.mxu0
    %v241 = vadd.f32 %v219, %v240
    %242 = vdwg.mxu0
    %243 = vmatpush.msra.mxu0 %v215
    %244 = vmatpush.msra.mxu0 %v213
    %245 = vmatpush.msra.mxu0 %v211
    %246 = vmatpush.msra.mxu0 %v209
    %247 = vmatpush.msra.mxu0 %v207
    %248 = vmatpush.msra.mxu0 %v205
    %249 = vmatpush.msra.mxu0 %v203
    %250 = vmatpush.msra.mxu0 %v201
    %251 = vmatpush.msra.mxu0 %v199
    %252 = vmatpush.msra.mxu0 %v197
    %253 = vmatpush.msra.mxu0 %v195
    %254 = vmatpush.msra.mxu0 %v193
    %255 = vmatpush.msra.mxu0 %v191
    %256 = vmatpush.msra.mxu0 %v189
    %257 = vmatpush.msra.mxu0 %v187
    %258 = vmatpush.msra.mxu0 %v185
    %259 = vmatmul.f32.gmra.mxu0 %v152
    %v260 = vpop.f32.mrf.mxu0
    %v261 = vadd.f32 %v241, %v260
    %262 = vdwg.mxu0
    %263 = vmatpush.msra.mxu0 %v184
    %264 = vmatpush.msra.mxu0 %v182
    %265 = vmatpush.msra.mxu0 %v180
    %266 = vmatpush.msra.mxu0 %v178
    %267 = vmatpush.msra.mxu0 %v176
    %268 = vmatpush.msra.mxu0 %v174
    %269 = vmatpush.msra.mxu0 %v172
    %270 = vmatpush.msra.mxu0 %v170
    %271 = vmatpush.msra.mxu0 %v168
    %272 = vmatpush.msra.mxu0 %v166
    %273 = vmatpush.msra.mxu0 %v164
    %274 = vmatpush.msra.mxu0 %v162
    %275 = vmatpush.msra.mxu0 %v160
    %276 = vmatpush.msra.mxu0 %v158
    %277 = vmatpush.msra.mxu0 %v156
    %278 = vmatpush.msra.mxu0 %v154
    %279 = vmatmul.f32.gmra.mxu0 %v151
    %v280 = vpop.f32.mrf.mxu0
    %v281 = vadd.f32 %v220, %v280
    %282 = vdwg.mxu0
    %283 = vmatpush.msra.mxu0 %v216
    %284 = vmatpush.msra.mxu0 %v214
    %285 = vmatpush.msra.mxu0 %v212
    %286 = vmatpush.msra.mxu0 %v210
    %287 = vmatpush.msra.mxu0 %v208
    %288 = vmatpush.msra.mxu0 %v206
    %289 = vmatpush.msra.mxu0 %v204
    %290 = vmatpush.msra.mxu0 %v202
    %291 = vmatpush.msra.mxu0 %v200
    %292 = vmatpush.msra.mxu0 %v198
    %293 = vmatpush.msra.mxu0 %v196
    %294 = vmatpush.msra.mxu0 %v194
    %295 = vmatpush.msra.mxu0 %v192
    %296 = vmatpush.msra.mxu0 %v190
    %297 = vmatpush.msra.mxu0 %v188
    %298 = vmatpush.msra.mxu0 %v186
    %299 = vmatmul.f32.gmra.mxu0 %v152
    %v300 = vpop.f32.mrf.mxu0
    %v301 = vadd.f32 %v281, %v300
    %302 = vdwg.mxu0
    %v303 = vmax.f32 %v261, 0.0
    %v304 = vmax.f32 %v301, 0.0
    %v305 = vld [vmem:[#allocation7] sm:$0xff]
    %v306 = vld [vmem:[#allocation7 + $0x8] sm:$0xff]
    %v307 = vld [vmem:[#allocation7 + $0x10] sm:$0xff]
    %v308 = vld [vmem:[#allocation7 + $0x18] sm:$0xff]
    %v309 = vld [vmem:[#allocation7 + $0x20] sm:$0xff]
    %v310 = vld [vmem:[#allocation7 + $0x28] sm:$0xff]
    %v311 = vld [vmem:[#allocation7 + $0x30] sm:$0xff]
    %v312 = vld [vmem:[#allocation7 + $0x38] sm:$0xff]
    %v313 = vld [vmem:[#allocation7 + $0x40] sm:$0xff]
    %v314 = vld [vmem:[#allocation7 + $0x48] sm:$0xff]
    %v315 = vld [vmem:[#allocation7 + $0x50] sm:$0xff]
    %v316 = vld [vmem:[#allocation7 + $0x58] sm:$0xff]
    %v317 = vld [vmem:[#allocation7 + $0x60] sm:$0xff]
    %v318 = vld [vmem:[#allocation7 + $0x68] sm:$0xff]
    %v319 = vld [vmem:[#allocation7 + $0x70] sm:$0xff]
    %v320 = vld [vmem:[#allocation7 + $0x78] sm:$0xff]
    %v321 = vld [vmem:[#allocation7 + $0x80] sm:$0xff]
    %v322 = vld [vmem:[#allocation7 + $0x88] sm:$0xff]
    %v323 = vld [vmem:[#allocation7 + $0x90] sm:$0xff]
    %v324 = vld [vmem:[#allocation7 + $0x98] sm:$0xff]
    %v325 = vld [vmem:[#allocation7 + $0xa0] sm:$0xff]
    %v326 = vld [vmem:[#allocation7 + $0xa8] sm:$0xff]
    %v327 = vld [vmem:[#allocation7 + $0xb0] sm:$0xff]
    %v328 = vld [vmem:[#allocation7 + $0xb8] sm:$0xff]
    %v329 = vld [vmem:[#allocation7 + $0xc0] sm:$0xff]
    %v330 = vld [vmem:[#allocation7 + $0xc8] sm:$0xff]
    %v331 = vld [vmem:[#allocation7 + $0xd0] sm:$0xff]
    %v332 = vld [vmem:[#allocation7 + $0xd8] sm:$0xff]
    %v333 = vld [vmem:[#allocation7 + $0xe0] sm:$0xff]
    %v334 = vld [vmem:[#allocation7 + $0xe8] sm:$0xff]
    %v335 = vld [vmem:[#allocation7 + $0xf0] sm:$0xff]
    %v336 = vld [vmem:[#allocation7 + $0xf8] sm:$0xff]
    %v337 = vld [vmem:[%s8] sm:$0x1]
    %v339 = vperm.slane %v337, 0
    %341 = vmatpush.msra.mxu0 %v320
    %342 = vmatpush.msra.mxu0 %v319
    %343 = vmatpush.msra.mxu0 %v318
    %344 = vmatpush.msra.mxu0 %v317
    %345 = vmatpush.msra.mxu0 %v316
    %346 = vmatpush.msra.mxu0 %v315
    %347 = vmatpush.msra.mxu0 %v314
    %348 = vmatpush.msra.mxu0 %v313
    %349 = vmatpush.msra.mxu0 %v312
    %350 = vmatpush.msra.mxu0 %v311
    %351 = vmatpush.msra.mxu0 %v310
    %352 = vmatpush.msra.mxu0 %v309
    %353 = vmatpush.msra.mxu0 %v308
    %354 = vmatpush.msra.mxu0 %v307
    %355 = vmatpush.msra.mxu0 %v306
    %356 = vmatpush.msra.mxu0 %v305
    %357 = vmatmul.f32.gmra.mxu0 %v303
    %v358 = vpop.f32.mrf.mxu0
    %v359 = vadd.f32 %v339, %v358
    %360 = vdwg.mxu0
    %361 = vmatpush.msra.mxu0 %v336
    %362 = vmatpush.msra.mxu0 %v335
    %363 = vmatpush.msra.mxu0 %v334
    %364 = vmatpush.msra.mxu0 %v333
    %365 = vmatpush.msra.mxu0 %v332
    %366 = vmatpush.msra.mxu0 %v331
    %367 = vmatpush.msra.mxu0 %v330
    %368 = vmatpush.msra.mxu0 %v329
    %369 = vmatpush.msra.mxu0 %v328
    %370 = vmatpush.msra.mxu0 %v327
    %371 = vmatpush.msra.mxu0 %v326
    %372 = vmatpush.msra.mxu0 %v325
    %373 = vmatpush.msra.mxu0 %v324
    %374 = vmatpush.msra.mxu0 %v323
    %375 = vmatpush.msra.mxu0 %v322
    %376 = vmatpush.msra.mxu0 %v321
    %377 = vmatmul.f32.gmra.mxu0 %v304
    %v378 = vpop.f32.mrf.mxu0
    %v379 = vadd.f32 %v359, %v378
    %380 = vdwg.mxu0
    %381 = vst [vmem:[#allocation8] sm:$0xff] %v379
    // Predicated region
    $region50: #{tpu_custom_call.1} parent=1 // pred_check
      _
    $region51: #{tpu_custom_call.1} parent=1 // pred_check_branch
      %383 = sbr.rel (0) target = $region53
    $region52: #{tpu_custom_call.1} parent=1 // pred_region
      %385 = vsyncadd [#allocation4], 0
      %s387 = sshll.u32 [#allocation8], 4
      %s388 = int_to_ptr.vmem [resolvable:$true] %s387
      %s389 = sshll.u32 %s9, 4
      %s390 = int_to_ptr.hbm [resolvable:$true] %s389
      %392 = dma.vmem_to_hbm [thread:$0]  %s388, 128, %s390, [#allocation4]
    $region53: #{tpu_custom_call.1} parent=1 // pred_fallthru
      _
    // Predicated region
    $region54: #{tpu_custom_call.1} parent=1 // pred_check
      _
    $region55: #{tpu_custom_call.1} parent=1 // pred_check_branch
      %394 = sbr.rel (0) target = $region57
    $region56: #{tpu_custom_call.1} parent=1 // pred_region
      %396 = dma.done [#allocation4], 128
    $region57: #{tpu_custom_call.1} parent=1 // pred_fallthru
      _
    %397 = vsyncpa [#allocation3], 1
    %398 = vsyncpa [#allocation6], 1
    %399 = vsyncpa [#allocation4], 1

</llo_original>
